<compile_context>
chip_gen: v7x
topology: tpu7x:2x2x1
jax: 0.10.0
libtpu: 0.0.40
codegen_flags: <defaults>
</compile_context>

<pallas_src>
import numpy as np
import jax
import jax.numpy as jnp
from jax.experimental import pallas as pl
from jax.experimental.pallas import tpu as pltpu


def _round_up(x, m):
    return -(-x // m) * m


def _cdiv(a, b):
    return -(-a // b)


def _vmem_capacity_bytes():
    """Physical VMEM of the current chip; conservative 64 MiB (v7x) fallback."""
    try:
        info = pltpu.get_tpu_info()
        cap = getattr(info, "vmem_capacity_bytes", None)
        if cap:
            return int(cap)
    except Exception:
        pass
    return 64 << 20


def _make_intra_agg_kernel(tk, Dp, embed_resident, use_scratch):
    """Build the kernel body for the chosen embed-residency / scratch config."""

    def kernel(inv_ref, adj_ref, emb_ref, self_ref, out_ref, *scratch):
        k = pl.program_id(1)
        nk = pl.num_programs(1)

        if embed_resident:
            # Whole embed matrix is VMEM-resident (constant block index);
            # pick out this step's contraction rows with an aligned slice.
            row0 = pl.multiple_of(k * tk, 128)
            emb_blk = emb_ref[pl.ds(row0, tk), :]
        else:
            emb_blk = emb_ref[...]

        partial = jnp.dot(adj_ref[...], emb_blk,
                          preferred_element_type=jnp.float32)

        if use_scratch:
            acc_ref = scratch[0]

            @pl.when(k == 0)
            def _init():
                acc_ref[...] = jnp.zeros_like(acc_ref)

            acc_ref[...] += partial

            @pl.when(k == nk - 1)
            def _finalize():
                # f32 epilogue (v5e has no bf16 VALU path); downcast at store.
                f1 = acc_ref[...] * inv_ref[...]
                out_ref[:, :Dp] = f1.astype(out_ref.dtype)
                out_ref[:, Dp:2 * Dp] = (
                    self_ref[...].astype(jnp.float32) - f1).astype(out_ref.dtype)
        else:
            # f32 output: accumulate directly in the resident output block.
            @pl.when(k == 0)
            def _init():
                out_ref[:, :Dp] = jnp.zeros((out_ref.shape[0], Dp),
                                            out_ref.dtype)

            out_ref[:, :Dp] += partial

            @pl.when(k == nk - 1)
            def _finalize():
                f1 = out_ref[:, :Dp] * inv_ref[...]
                out_ref[:, :Dp] = f1
                out_ref[:, Dp:2 * Dp] = self_ref[...].astype(jnp.float32) - f1

    return kernel


def intra_agg_pallas(adjacency, inv_deg, embed_matrix, self_feats, *,
                     tm_max=512, tk_max=1024, use_bf16=True,
                     force_stream_embed=False):
    """Returns concat([(adj @ embed) * inv_deg, self - (adj @ embed) * inv_deg], 1).

    `adjacency` is the un-normalized 0/1 neighbor mask; the per-row mean
    (1/deg) is applied in f32 inside the kernel epilogue.
    """
    B, U = adjacency.shape
    D = embed_matrix.shape[1]
    assert embed_matrix.shape[0] == U
    assert self_feats.shape == (B, D)

    out_dtype = self_feats.dtype
    in_dtype = jnp.bfloat16 if use_bf16 else jnp.float32
    in_isz = jnp.dtype(in_dtype).itemsize
    out_isz = jnp.dtype(out_dtype).itemsize

    # ---- tile selection -----------------------------------------------------
    Dp = _round_up(D, 128)                        # lane-dense feature dim
    # >=2 row tiles whenever B is splittable (feeds both v7x TensorCores); rows
    # rounded to 16 so bf16 mask blocks are whole (16,128) native tiles; tiles
    # sized from an even split of B/U so padding waste stays small.
    n_i = max(_cdiv(B, tm_max), 2) if B > 16 else 1
    tm = min(tm_max, _round_up(_cdiv(B, n_i), 16))
    Bp = _round_up(B, tm)
    n_k = _cdiv(U, tk_max)
    tk = min(tk_max, _round_up(_cdiv(U, n_k), 128))
    Up = _round_up(U, tk)

    vmem_cap = _vmem_capacity_bytes()
    # Keep the neighbor embeddings VMEM-resident (fetched once) when they fit
    # comfortably; budget 2x for pipelining head-room.
    embed_resident = (not force_stream_embed
                      and 2 * Up * Dp * in_isz <= vmem_cap // 4)
    use_scratch = out_dtype != jnp.float32

    # ---- pad / cast only when strictly required -----------------------------
    adj = jnp.asarray(adjacency)
    if adj.dtype != in_dtype:
        adj = adj.astype(in_dtype)
    if (B, U) != (Bp, Up):
        adj = jnp.zeros((Bp, Up), in_dtype).at[:B, :U].set(adj)
    emb = jnp.asarray(embed_matrix)
    if emb.dtype != in_dtype:
        emb = emb.astype(in_dtype)
    if (U, D) != (Up, Dp):
        emb = jnp.zeros((Up, Dp), in_dtype).at[:U, :D].set(emb)
    sf = jnp.asarray(self_feats)
    if (B, D) != (Bp, Dp):
        sf = jnp.zeros((Bp, Dp), out_dtype).at[:B, :D].set(sf)
    inv = jnp.asarray(inv_deg, jnp.float32).reshape(B, 1)
    if B != Bp:
        inv = jnp.zeros((Bp, 1), jnp.float32).at[:B].set(inv)

    grid = (Bp // tm, Up // tk)                   # reduction (U) axis last

    embed_spec = (pl.BlockSpec((Up, Dp), lambda i, k: (0, 0)) if embed_resident
                  else pl.BlockSpec((tk, Dp), lambda i, k: (k, 0)))
    scratch_shapes = [pltpu.VMEM((tm, Dp), jnp.float32)] if use_scratch else []

    # ---- VMEM budget & cost hint --------------------------------------------
    emb_bytes = (2 * Up * Dp * in_isz) if embed_resident else (2 * tk * Dp * in_isz)
    vmem_bytes = (2 * tm * tk * in_isz            # adjacency (double-buffered)
                  + emb_bytes                     # embeddings
                  + 2 * tm * 4                    # inv_deg
                  + 2 * tm * Dp * out_isz         # self feats
                  + 2 * tm * 2 * Dp * out_isz     # fused output
                  + (tm * Dp * 4 if use_scratch else 0))
    vmem_limit = int(min(max(int(vmem_bytes * 1.5), 16 << 20),
                         (3 * vmem_cap) // 4))

    emb_reads = 1 if embed_resident else (Bp // tm)
    cost = pl.CostEstimate(
        flops=2 * Bp * Up * Dp + 3 * Bp * Dp,
        transcendentals=0,
        bytes_accessed=(Bp * Up * in_isz + emb_reads * Up * Dp * in_isz
                        + Bp * Dp * out_isz + Bp * 4 + 2 * Bp * Dp * out_isz))

    kernel = _make_intra_agg_kernel(tk, Dp, embed_resident, use_scratch)

    out = pl.pallas_call(
        kernel,
        out_shape=jax.ShapeDtypeStruct((Bp, 2 * Dp), out_dtype),
        grid_spec=pltpu.PrefetchScalarGridSpec(
            num_scalar_prefetch=0,
            grid=grid,
            in_specs=[
                pl.BlockSpec((tm, 1), lambda i, k: (i, 0)),    # inv_deg (f32)
                pl.BlockSpec((tm, tk), lambda i, k: (i, k)),   # 0/1 adjacency
                embed_spec,                                    # neighbor embeds
                pl.BlockSpec((tm, Dp), lambda i, k: (i, 0)),   # self feats
            ],
            out_specs=pl.BlockSpec((tm, 2 * Dp), lambda i, k: (i, 0)),
            scratch_shapes=scratch_shapes,
        ),
        compiler_params=pltpu.CompilerParams(
            dimension_semantics=("parallel", "arbitrary"),
            vmem_limit_bytes=vmem_limit),
        cost_estimate=cost,
    )(inv, adj, emb, sf)

    if D == Dp:                                   # no pad lanes: output is final
        return out if B == Bp else out[:B]
    # strip feature padding; f1/f2 live at lane-aligned offsets 0 and Dp
    return jnp.concatenate([out[:B, :D], out[:B, Dp:Dp + D]], axis=1)


def intra_agg_forward(embedding, nodes, neighbor_lists, unique_nodes_new_index,
                      self_feats, *, use_bf16=True, **pallas_kwargs):
    """Mirrors IntraAgg.forward: host-side mask construction + Pallas hot path."""
    unique_nodes_list = list(set.union(*neighbor_lists))
    unique_nodes = {n: i for i, n in enumerate(unique_nodes_list)}

    B, U = len(neighbor_lists), len(unique_nodes_list)
    adj = np.zeros((B, U), dtype=np.float32)      # exact 0/1 adjacency
    inv_deg = np.ones((B,), dtype=np.float32)
    for i, neighbor_list in enumerate(neighbor_lists):
        cols = {unique_nodes[n] for n in neighbor_list}
        for c in cols:
            adj[i, c] = 1.0
        inv_deg[i] = 1.0 / max(len(cols), 1)      # mean applied in-kernel (f32)
    if use_bf16:
        adj = adj.astype(jnp.bfloat16)            # 0/1 is exact in bf16

    neighbors_new_index = np.asarray(
        [unique_nodes_new_index[n] for n in unique_nodes_list], dtype=np.int32)
    embed_matrix = embedding[jnp.asarray(neighbors_new_index)]  # gather (glue)

    return intra_agg_pallas(jnp.asarray(adj), jnp.asarray(inv_deg),
                            embed_matrix, self_feats, use_bf16=use_bf16,
                            **pallas_kwargs)


if __name__ == "__main__":
    key = jax.random.PRNGKey(0)
    k_emb, k_self = jax.random.split(key)

    num_all_nodes = 16   # nodes whose embeddings are available in this batch
    batch_size = 8       # nodes being aggregated
    hidden = 32          # feature dim

    embedding = jax.random.normal(k_emb, (num_all_nodes, hidden), dtype=jnp.float32)
    self_feats = jax.random.normal(k_self, (batch_size, hidden), dtype=jnp.float32)

    nodes = list(range(batch_size))
    neighbor_lists = [
        {1, 2, 3},
        {0, 4},
        {5, 6, 7, 8},
        {2, 9},
        {10},
        {3, 11, 12},
        {13, 14},
        {0, 15, 1},
    ]
    unique_nodes_new_index = {i: i for i in range(num_all_nodes)}

    # ---- pure numpy references (full f32 and bf16-rounded-embedding) --------
    unique_nodes_list = list(set.union(*neighbor_lists))
    unique_nodes = {n: i for i, n in enumerate(unique_nodes_list)}
    U = len(unique_nodes_list)
    mask01 = np.zeros((batch_size, U), dtype=np.float32)
    for i, nl in enumerate(neighbor_lists):
        for n in nl:
            mask01[i, unique_nodes[n]] = 1.0
    deg = mask01.sum(1, keepdims=True)
    deg[deg == 0] = 1.0
    emb_np = np.asarray(embedding)[np.asarray(
        [unique_nodes_new_index[n] for n in unique_nodes_list])]
    self_np = np.asarray(self_feats)

    f1_f32 = (mask01 / deg) @ emb_np
    ref_f32 = np.concatenate([f1_f32, self_np - f1_f32], axis=1)

    emb_bf = np.asarray(jnp.asarray(emb_np, jnp.bfloat16).astype(jnp.float32))
    f1_bf = (mask01 @ emb_bf) / deg
    ref_bf = np.concatenate([f1_bf, self_np - f1_bf], axis=1)

    # 1) default path: bf16 operands, VMEM-resident embed, accumulate in output
    out = jax.block_until_ready(intra_agg_forward(
        embedding, nodes, neighbor_lists, unique_nodes_new_index, self_feats))
    assert out.shape == (batch_size, 2 * hidden)
    np.testing.assert_allclose(np.asarray(out), ref_bf, rtol=1e-4, atol=1e-5)
    np.testing.assert_allclose(np.asarray(out), ref_f32, rtol=2e-2, atol=5e-2)

    # 2) streamed-embed fallback (the path large U takes)
    out_s = jax.block_until_ready(intra_agg_forward(
        embedding, nodes, neighbor_lists, unique_nodes_new_index, self_feats,
        force_stream_embed=True))
    np.testing.assert_allclose(np.asarray(out_s), ref_bf, rtol=1e-4, atol=1e-5)

    # 3) f32 escape hatch (no operand rounding on our side; MXU default precision)
    out_f = jax.block_until_ready(intra_agg_forward(
        embedding, nodes, neighbor_lists, unique_nodes_new_index, self_feats,
        use_bf16=False))
    np.testing.assert_allclose(np.asarray(out_f), ref_f32, rtol=2e-2, atol=5e-2)

    # 4) bf16 self_feats / bf16 output (exercises the f32 scratch accumulator)
    out_b = jax.block_until_ready(intra_agg_forward(
        embedding, nodes, neighbor_lists, unique_nodes_new_index,
        self_feats.astype(jnp.bfloat16)))
    np.testing.assert_allclose(np.asarray(out_b.astype(jnp.float32)), ref_bf,
                               rtol=2e-2, atol=5e-2)

    print("KERNEL_OK")
</pallas_src>

<mosaic_0001>
module attributes {stable_mosaic.version = 11 : i64} {
  func.func @kernel(%arg0: i32, %arg1: i32, %arg2: memref<16x1xf32, #tpu.memory_space<vmem>>, %arg3: memref<16x128xbf16, #tpu.memory_space<vmem>>, %arg4: memref<128x128xbf16, #tpu.memory_space<vmem>>, %arg5: memref<16x128xf32, #tpu.memory_space<vmem>>, %arg6: memref<16x256xf32, #tpu.memory_space<vmem>>) attributes {dimension_semantics = [#tpu.dimension_semantics<parallel>, #tpu.dimension_semantics<arbitrary>], iteration_bounds = array<i64: 1, 1>, scalar_prefetch = 0 : i64, scratch_operands = 0 : i64, tpu.core_type = #tpu.core_type<tc>, window_params = [{transform_indices = @transform_0, window_bounds = array<i64: 16, 1>}, {transform_indices = @transform_1, window_bounds = array<i64: 16, 128>}, {pipeline_mode = #tpu.pipeline_mode<synchronous>, transform_indices = @transform_2, window_bounds = array<i64: 128, 128>}, {transform_indices = @transform_3, window_bounds = array<i64: 16, 128>}, {transform_indices = @transform_4, window_bounds = array<i64: 16, 256>}]} {
    %c128_i32 = arith.constant 128 : i32
    %0 = arith.muli %arg1, %c128_i32 : i32
    %1 = tpu.assume_multiple %0, 128 : i32
    %2 = arith.index_cast %1 : i32 to index
    %c0 = arith.constant 0 : index
    %3 = vector.load %arg4[%2, %c0] : memref<128x128xbf16, #tpu.memory_space<vmem>>, vector<128x128xbf16>
    %c0_0 = arith.constant 0 : index
    %c0_1 = arith.constant 0 : index
    %4 = vector.load %arg3[%c0_0, %c0_1] : memref<16x128xbf16, #tpu.memory_space<vmem>>, vector<16x128xbf16>
    %cst = arith.constant dense<0.000000e+00> : vector<16x128xf32>
    %5 = tpu.matmul %4, %3, %cst {dimension_numbers = #tpu.dot_dimension_numbers<[1], [0], [0], [1], [0, 0, 1, 1], [], []>} : vector<16x128xbf16>, vector<128x128xbf16>, vector<16x128xf32> -> vector<16x128xf32>
    %c0_i32 = arith.constant 0 : i32
    %6 = arith.cmpi eq, %arg1, %c0_i32 : i32
    %7 = arith.extui %6 : i1 to i32
    %c0_i32_2 = arith.constant 0 : i32
    %8 = arith.cmpi ne, %7, %c0_i32_2 : i32
    scf.if %8 {
      %cst_9 = arith.constant 0.000000e+00 : f32
      %15 = vector.broadcast %cst_9 : f32 to vector<16x128xf32>
      %c0_10 = arith.constant 0 : index
      %c0_11 = arith.constant 0 : index
      %16 = vector.load %arg6[%c0_10, %c0_11] : memref<16x256xf32, #tpu.memory_space<vmem>>, vector<16x128xf32>
      tpu.vector_store %arg6[%c0_10, %c0_11], %15 {strides = array<i32>} : memref<16x256xf32, #tpu.memory_space<vmem>>, vector<16x128xf32>,
    } else {
    }
    %c0_3 = arith.constant 0 : index
    %c0_4 = arith.constant 0 : index
    %9 = vector.load %arg6[%c0_3, %c0_4] : memref<16x256xf32, #tpu.memory_space<vmem>>, vector<16x128xf32>
    %10 = arith.addf %9, %5 : vector<16x128xf32>
    %c0_5 = arith.constant 0 : index
    %c0_6 = arith.constant 0 : index
    %11 = vector.load %arg6[%c0_5, %c0_6] : memref<16x256xf32, #tpu.memory_space<vmem>>, vector<16x128xf32>
    tpu.vector_store %arg6[%c0_5, %c0_6], %10 {strides = array<i32>} : memref<16x256xf32, #tpu.memory_space<vmem>>, vector<16x128xf32>,
    %c0_i32_7 = arith.constant 0 : i32
    %12 = arith.cmpi eq, %arg1, %c0_i32_7 : i32
    %13 = arith.extui %12 : i1 to i32
    %c0_i32_8 = arith.constant 0 : i32
    %14 = arith.cmpi ne, %13, %c0_i32_8 : i32
    scf.if %14 {
      %c0_9 = arith.constant 0 : index
      %c0_10 = arith.constant 0 : index
      %15 = vector.load %arg6[%c0_9, %c0_10] : memref<16x256xf32, #tpu.memory_space<vmem>>, vector<16x128xf32>
      %c0_11 = arith.constant 0 : index
      %c0_12 = arith.constant 0 : index
      %16 = vector.load %arg2[%c0_11, %c0_12] : memref<16x1xf32, #tpu.memory_space<vmem>>, vector<16x1xf32>
      %17 = vector.broadcast %16 : vector<16x1xf32> to vector<16x128xf32>
      %18 = arith.mulf %15, %17 : vector<16x128xf32>
      %c0_13 = arith.constant 0 : index
      %c0_14 = arith.constant 0 : index
      %19 = vector.load %arg6[%c0_13, %c0_14] : memref<16x256xf32, #tpu.memory_space<vmem>>, vector<16x128xf32>
      tpu.vector_store %arg6[%c0_13, %c0_14], %18 {strides = array<i32>} : memref<16x256xf32, #tpu.memory_space<vmem>>, vector<16x128xf32>,
      %c0_15 = arith.constant 0 : index
      %c0_16 = arith.constant 0 : index
      %20 = vector.load %arg5[%c0_15, %c0_16] : memref<16x128xf32, #tpu.memory_space<vmem>>, vector<16x128xf32>
      %21 = arith.subf %20, %18 : vector<16x128xf32>
      %c0_17 = arith.constant 0 : index
      %c128 = arith.constant 128 : index
      %22 = vector.load %arg6[%c0_17, %c128] : memref<16x256xf32, #tpu.memory_space<vmem>>, vector<16x128xf32>
      tpu.vector_store %arg6[%c0_17, %c128], %21 {strides = array<i32>} : memref<16x256xf32, #tpu.memory_space<vmem>>, vector<16x128xf32>,
    } else {
    }
    return
  }
  func.func @transform_0(%arg0: i32, %arg1: i32) -> (i32, i32) {
    %c0_i32 = arith.constant 0 : i32
    %c0_i32_0 = arith.constant 0 : i32
    return %arg0, %c0_i32 : i32, i32
  }
  func.func @transform_1(%arg0: i32, %arg1: i32) -> (i32, i32) {
    %c0_i32 = arith.constant 0 : i32
    return %arg0, %arg1 : i32, i32
  }
  func.func @transform_2(%arg0: i32, %arg1: i32) -> (i32, i32) {
    %c0_i32 = arith.constant 0 : i32
    %c0_i32_0 = arith.constant 0 : i32
    %c0_i32_1 = arith.constant 0 : i32
    return %c0_i32, %c0_i32_0 : i32, i32
  }
  func.func @transform_3(%arg0: i32, %arg1: i32) -> (i32, i32) {
    %c0_i32 = arith.constant 0 : i32
    %c0_i32_0 = arith.constant 0 : i32
    return %arg0, %c0_i32 : i32, i32
  }
  func.func @transform_4(%arg0: i32, %arg1: i32) -> (i32, i32) {
    %c0_i32 = arith.constant 0 : i32
    %c0_i32_0 = arith.constant 0 : i32
    return %arg0, %c0_i32 : i32, i32
  }
}

</mosaic_0001>

<llo_original>
// kernel: tpu_custom_call.1
$region0: #{tpu_custom_call.1}
  #allocation0 [shape = 'u32[]', space=smem, size = 0x4, offset = 0x4, fixed_abs, tag = 'smem constant byte address 0x4 - core index']
  #allocation1 [shape = 'u32[144,128]{1,0:T(1,128)}', space=vmem, size = 0x12000, scoped, tag = 'internal scratch']
  %s0 = inlined_call_operand.vmem [shape: f32[16,1], index: 0, kind: input, shape index: {}]
  %s1 = inlined_call_operand.vmem [shape: bf16[16,128], index: 1, kind: input, shape index: {}]
  %s2 = inlined_call_operand.hbm [shape: bf16[128,128], index: 2, kind: input, shape index: {}]
  %s3 = inlined_call_operand.vmem [shape: f32[16,128], index: 3, kind: input, shape index: {}]
  %s4 = inlined_call_operand.hbm [shape: f32[16,256], index: 4, kind: output, shape index: {}]
  %s5 = sld [smem:[#allocation0]]
  $region38: #{tpu_custom_call.1} parent=0
    _
  %s7 = ssub.s32 1, %s5
  %s8 = scalar_select 0, %s7, %s5
  $region1: #{tpu_custom_call.1} parent=0
    #allocation2 [shape = 'u8[32768]{0}', space=vmem, size = 0x8000, scoped, tag = 'input window, operand 2, single buffered']
    #allocation3 [shape = 's32[1]{0}', space=sflag, size = 0x4, scoped, tag = 'scoped memory for tpu_custom_call.1']
    #allocation4 [shape = 's32[1]{0}', space=sflag, size = 0x4, scoped, tag = 'scoped memory for tpu_custom_call.1']
    #allocation5 [shape = 'u8[16384]{0}', space=vmem, size = 0x4000, scoped, tag = 'output window, operand 0, single buffered']
    %9 = vsyncpa [#allocation3], 0
    %10 = vsyncpa [#allocation4], 0
    // Predicated region
    $region2: #{tpu_custom_call.1} parent=1 // pred_check
      _
    $region3: #{tpu_custom_call.1} parent=1 // pred_check_branch
      %12 = sbr.rel (0) target = $region5
    $region4: #{tpu_custom_call.1} parent=1 // pred_region
      _
    $region5: #{tpu_custom_call.1} parent=1 // pred_fallthru
      _
    // Predicated region
    $region6: #{tpu_custom_call.1} parent=1 // pred_check
      _
    $region7: #{tpu_custom_call.1} parent=1 // pred_check_branch
      %14 = sbr.rel (0) target = $region9
    $region8: #{tpu_custom_call.1} parent=1 // pred_region
      _
    $region9: #{tpu_custom_call.1} parent=1 // pred_fallthru
      _
    // Predicated region
    $region10: #{tpu_custom_call.1} parent=1 // pred_check
      _
    $region11: #{tpu_custom_call.1} parent=1 // pred_check_branch
      %16 = sbr.rel (0) target = $region13
    $region12: #{tpu_custom_call.1} parent=1 // pred_region
      %s18 = ssub.s32 1024, 1024
      %19 = vsyncadd [#allocation3], %s18
      %s20 = sshll.u32 [#allocation2], 4
      %s21 = int_to_ptr.vmem [resolvable:$true] %s20
      %26 = dma.hbm_to_vmem [thread:$0]  %s2, 1024, %s21, [#allocation3], 64, 64, 4
    $region13: #{tpu_custom_call.1} parent=1 // pred_fallthru
      _
    // Predicated region
    $region14: #{tpu_custom_call.1} parent=1 // pred_check
      _
    $region15: #{tpu_custom_call.1} parent=1 // pred_check_branch
      %28 = sbr.rel (0) target = $region17
    $region16: #{tpu_custom_call.1} parent=1 // pred_region
      _
    $region17: #{tpu_custom_call.1} parent=1 // pred_fallthru
      _
    // Predicated region
    $region18: #{tpu_custom_call.1} parent=1 // pred_check
      _
    $region19: #{tpu_custom_call.1} parent=1 // pred_check_branch
      %30 = sbr.rel (0) target = $region21
    $region20: #{tpu_custom_call.1} parent=1 // pred_region
      %31 = dma.done [#allocation3], 1024
    $region21: #{tpu_custom_call.1} parent=1 // pred_fallthru
      _
    %s33 = smul.u32 0, 128
    %s34 = sshra.s32 %s33, 3
    %s35 = sand.u32 %s33, 7
    %s36 = smul.addr %s34, 4
    %s37 = scalar_lea.vmem [#allocation2], %s36
    %v38 = vld [vmem:[%s37] sm:$0xf]
    %v39 = vld [vmem:[%s37 + $0x4] sm:$0xf]
    %v40 = vld [vmem:[%s37 + $0x8] sm:$0xf]
    %v41 = vld [vmem:[%s37 + $0xc] sm:$0xf]
    %v42 = vld [vmem:[%s37 + $0x10] sm:$0xf]
    %v43 = vld [vmem:[%s37 + $0x14] sm:$0xf]
    %v44 = vld [vmem:[%s37 + $0x18] sm:$0xf]
    %v45 = vld [vmem:[%s37 + $0x1c] sm:$0xf]
    %v46 = vld [vmem:[%s37 + $0x20] sm:$0xf]
    %v47 = vld [vmem:[%s37 + $0x24] sm:$0xf]
    %v48 = vld [vmem:[%s37 + $0x28] sm:$0xf]
    %v49 = vld [vmem:[%s37 + $0x2c] sm:$0xf]
    %v50 = vld [vmem:[%s37 + $0x30] sm:$0xf]
    %v51 = vld [vmem:[%s37 + $0x34] sm:$0xf]
    %v52 = vld [vmem:[%s37 + $0x38] sm:$0xf]
    %v53 = vld [vmem:[%s37 + $0x3c] sm:$0xf]
    %v54 = vld [vmem:[%s1] sm:$0xf]
    %v55 = vld [vmem:[%s1 + $0x4] sm:$0xf]
    %v58 = vunpack.c.l.b16 %v54
    %v59 = vunpack.c.l.b16 %v55
    %v60 = vpack.c.b16 %v59, %v58
    %v78 = vunpack.c.l.b16 %v38
    %v79 = vunpack.c.l.b16 %v39
    %v80 = vunpack.c.l.b16 %v40
    %v81 = vunpack.c.l.b16 %v41
    %v82 = vunpack.c.l.b16 %v42
    %v83 = vunpack.c.l.b16 %v43
    %v84 = vunpack.c.l.b16 %v44
    %v85 = vunpack.c.l.b16 %v45
    %v86 = vunpack.c.l.b16 %v46
    %v87 = vunpack.c.l.b16 %v47
    %v88 = vunpack.c.l.b16 %v48
    %v89 = vunpack.c.l.b16 %v49
    %v90 = vunpack.c.l.b16 %v50
    %v91 = vunpack.c.l.b16 %v51
    %v92 = vunpack.c.l.b16 %v52
    %v93 = vunpack.c.l.b16 %v53
    %v94 = vpack.c.b16 %v79, %v78
    %v95 = vpack.c.b16 %v81, %v80
    %v96 = vpack.c.b16 %v83, %v82
    %v97 = vpack.c.b16 %v85, %v84
    %v98 = vpack.c.b16 %v87, %v86
    %v99 = vpack.c.b16 %v89, %v88
    %v100 = vpack.c.b16 %v91, %v90
    %v101 = vpack.c.b16 %v93, %v92
    %110 = vmatprep.subr.bf16.mxu0 0
    %111 = vmatpush1.bf16.msra.mxu0 %v94
    %112 = vmatprep.subr.bf16.mxu0 0
    %113 = vmatpush1.bf16.msra.mxu0 %v95
    %114 = vmatprep.subr.bf16.mxu0 0
    %115 = vmatpush1.bf16.msra.mxu0 %v96
    %116 = vmatprep.subr.bf16.mxu0 0
    %117 = vmatpush1.bf16.msra.mxu0 %v97
    %118 = vmatprep.subr.bf16.mxu0 0
    %119 = vmatpush1.bf16.msra.mxu0 %v98
    %120 = vmatprep.subr.bf16.mxu0 0
    %121 = vmatpush1.bf16.msra.mxu0 %v99
    %122 = vmatprep.subr.bf16.mxu0 0
    %123 = vmatpush1.bf16.msra.mxu0 %v100
    %124 = vmatprep.subr.bf16.mxu0 0
    %125 = vmatpush1.bf16.msra.mxu0 %v101
    %126 = vmatprep.subr.bf16.mxu0 0
    %127 = vmatpush1.bf16.msra.mxu0 0
    %128 = vmatprep.subr.bf16.mxu0 0
    %129 = vmatpush1.bf16.msra.mxu0 0
    %130 = vmatprep.subr.bf16.mxu0 0
    %131 = vmatpush1.bf16.msra.mxu0 0
    %132 = vmatprep.subr.bf16.mxu0 0
    %133 = vmatpush1.bf16.msra.mxu0 0
    %134 = vmatprep.subr.bf16.mxu0 0
    %135 = vmatpush1.bf16.msra.mxu0 0
    %136 = vmatprep.subr.bf16.mxu0 0
    %137 = vmatpush1.bf16.msra.mxu0 0
    %138 = vmatprep.subr.bf16.mxu0 0
    %139 = vmatpush1.bf16.msra.mxu0 0
    %140 = vmatprep.subr.bf16.mxu0 0
    %141 = vmatpush1.bf16.msra.mxu0 0
    %142 = vmatprep.mubr.bf16.mxu0 0
    %143 = vmatmul.mubr.bf16.gmra.mrb[0].mxu0 %v60
    %v144 = vpop.f32.mrb[0].mxu0
    %v145 = vadd.f32 0.0, %v144
    %v146 = vpop.f32.mrb[0].mxu0
    %v147 = vpop.f32.mrb[0].mxu0
    %v148 = vadd.f32 0.0, %v147
    %v149 = vpop.f32.mrb[0].mxu0
    %150 = vdwg.mxu0
    %p151 = scmp.eq.s32.totalorder 0, 0
    // Predicated region
    $region22: #{tpu_custom_call.1} parent=1 // pred_check
      %p152 = pneg %p151
    $region23: #{tpu_custom_call.1} parent=1 // pred_check_branch
      %154 = sbr.rel (%p152) target = $region25
    $region24: #{tpu_custom_call.1} parent=1 // pred_region
      %155 = vst [vmem:[#allocation5] sm:$0xff] 0.0
      %156 = vst [vmem:[#allocation5 + $0x10] sm:$0xff] 0.0
    $region25: #{tpu_custom_call.1} parent=1 // pred_fallthru
      _
    %v157 = vld [vmem:[#allocation5] sm:$0xff]
    %v158 = vld [vmem:[#allocation5 + $0x10] sm:$0xff]
    %v159 = vadd.f32 %v157, %v145
    %v160 = vadd.f32 %v158, %v148
    %161 = vst [vmem:[#allocation5] sm:$0xff] %v159
    %162 = vst [vmem:[#allocation5 + $0x10] sm:$0xff] %v160
    // Predicated region
    $region26: #{tpu_custom_call.1} parent=1 // pred_check
      %p163 = pneg %p151
    $region27: #{tpu_custom_call.1} parent=1 // pred_check_branch
      %165 = sbr.rel (%p163) target = $region29
    $region28: #{tpu_custom_call.1} parent=1 // pred_region
      %v166 = vld [vmem:[#allocation5] sm:$0xff]
      %v167 = vld [vmem:[#allocation5 + $0x10] sm:$0xff]
      %v168 = vld [vmem:[%s0] sm:$0xff]
      %v169 = vld [vmem:[%s0 + $0x8] sm:$0xff]
      %171 = vset.pattern.permute.xlu0 0
      %172 = vperm.xlu0 %171, %v168
      %v173 = vpop.permute.xlu0 %172
      %176 = vset.pattern.permute.xlu0 0
      %177 = vperm.xlu0 %176, %v169
      %v178 = vpop.permute.xlu0 %177
      %v180 = vmul.f32 %v166, %v173
      %v181 = vmul.f32 %v167, %v178
      %182 = vst [vmem:[#allocation5] sm:$0xff] %v180
      %183 = vst [vmem:[#allocation5 + $0x10] sm:$0xff] %v181
      %v184 = vld [vmem:[%s3] sm:$0xff]
      %v185 = vld [vmem:[%s3 + $0x8] sm:$0xff]
      %v186 = vsub.f32 %v184, %v180
      %v187 = vsub.f32 %v185, %v181
      %188 = vst [vmem:[#allocation5 + $0x8] sm:$0xff] %v186
      %189 = vst [vmem:[#allocation5 + $0x18] sm:$0xff] %v187
    $region29: #{tpu_custom_call.1} parent=1 // pred_fallthru
      _
    // Predicated region
    $region30: #{tpu_custom_call.1} parent=1 // pred_check
      _
    $region31: #{tpu_custom_call.1} parent=1 // pred_check_branch
      %191 = sbr.rel (0) target = $region33
    $region32: #{tpu_custom_call.1} parent=1 // pred_region
      %s193 = ssub.s32 512, 512
      %194 = vsyncadd [#allocation4], %s193
      %s195 = sshll.u32 [#allocation5], 4
      %s196 = int_to_ptr.vmem [resolvable:$true] %s195
      %201 = dma.vmem_to_hbm [thread:$0]  %s196, 512, %s4, [#allocation4], 256, 256, 16
    $region33: #{tpu_custom_call.1} parent=1 // pred_fallthru
      _
    // Predicated region
    $region34: #{tpu_custom_call.1} parent=1 // pred_check
      _
    $region35: #{tpu_custom_call.1} parent=1 // pred_check_branch
      %203 = sbr.rel (0) target = $region37
    $region36: #{tpu_custom_call.1} parent=1 // pred_region
      %204 = dma.done [#allocation4], 512
    $region37: #{tpu_custom_call.1} parent=1 // pred_fallthru
      _
    %205 = vsyncpa [#allocation3], 1
    %206 = vsyncpa [#allocation4], 1

</llo_original>
